<compile_context>
chip_gen: v7x
topology: tpu7x:2x2x1
jax: 0.10.0
libtpu: 0.0.40
codegen_flags: <defaults>
</compile_context>

<pallas_src>
import functools

import jax
import jax.numpy as jnp
from jax import lax
from jax.experimental import pallas as pl
from jax.experimental.pallas import tpu as pltpu


def _ntxent_rows_kernel(z_ref, out_ref, *, inv_temperature, batch, batch_padded,
                        tile_rows):
    """Grid step i: per-row NT-Xent losses for query rows [i*tm, (i+1)*tm) of BOTH
    views (p-half and t-half), against the full resident (pre-normalized) key set."""
    B = batch
    Bp = batch_padded
    tm = tile_rows
    inv_t = jnp.float32(inv_temperature)
    i = pl.program_id(0)
    r0 = pl.multiple_of(i * tm, 8)          # p-half query row offset
    r1 = pl.multiple_of(Bp + i * tm, 8)     # t-half query row offset

    # Query tiles are just rows of the normalized fused key buffer (no per-step
    # normalization, no per-step cast of the key set).
    p_q = z_ref[pl.ds(r0, tm), :]           # [tm, Dp]
    t_q = z_ref[pl.ds(r1, tm), :]           # [tm, Dp]
    keys = z_ref[...]                       # [2*Bp, Dp], resident across the grid

    # One wide matmul per query half; contract the last dims of both operands
    # (NT form, no transposed copy of the keys), f32 accumulation on the MXU.
    # TODO(synk): if the Mosaic dump shows a per-step vxpose of the key operand,
    #             feed a pre-transposed [Dp, 2*Bp] key buffer instead.
    dn = (((1,), (1,)), ((), ()))
    l_p = lax.dot_general(p_q, keys, dn, preferred_element_type=jnp.float32) * inv_t
    l_t = lax.dot_general(t_q, keys, dn, preferred_element_type=jnp.float32) * inv_t

    # Mask the self-similarity diagonal (and zero-padded key rows, if any).
    col = lax.broadcasted_iota(jnp.int32, (tm, 2 * Bp), 1)
    row = lax.broadcasted_iota(jnp.int32, (tm, 2 * Bp), 0) + i * tm
    neg_inf = jnp.float32(-1e30)
    mask_p = col == row              # p-query vs its own p-key
    mask_t = col == row + Bp         # t-query vs its own t-key
    if Bp != B:
        key_pad = ((col >= B) & (col < Bp)) | (col >= Bp + B)
        mask_p = mask_p | key_pad
        mask_t = mask_t | key_pad
    l_p = jnp.where(mask_p, neg_inf, l_p)
    l_t = jnp.where(mask_t, neg_inf, l_t)

    # Constant-max logsumexp: logits of L2-normalized vectors are bounded by 1/T,
    # so no per-row XLU max reduction is needed; masked entries underflow to 0.
    lse_p = inv_t + jnp.log(jnp.sum(jnp.exp(l_p - inv_t), axis=-1, keepdims=True))
    lse_t = inv_t + jnp.log(jnp.sum(jnp.exp(l_t - inv_t), axis=-1, keepdims=True))

    # Positive logit: row-wise dot of the paired rows (f32 accumulate).
    pos = jnp.sum(p_q.astype(jnp.float32) * t_q.astype(jnp.float32),
                  axis=-1, keepdims=True) * inv_t                       # [tm, 1]

    row_loss = (lse_p - pos) + (lse_t - pos)                            # [tm, 1]
    if Bp != B:
        row_idx = lax.broadcasted_iota(jnp.int32, (tm, 1), 0) + i * tm
        row_loss = jnp.where(row_idx < B, row_loss, jnp.float32(0.0))
    out_ref[...] = row_loss


def _round_up(x, m):
    return ((x + m - 1) // m) * m


def _pick_vmem_limit(resident_bytes, tile_rows, n_keys, n_buffers):
    """Scoped-VMEM request: resident input buffers + per-step f32 logit/exp
    temporaries + slack, clamped to ~3/4 of physical VMEM (64 MiB/TC on v7x,
    128 MiB on v5e/v6e)."""
    step_bytes = 2 * 4 * tile_rows * n_keys * 4   # 2 halves x ~4 f32 temporaries
    need = n_buffers * resident_bytes + step_bytes + (4 << 20)
    try:
        phys = pltpu.get_tpu_info().vmem_capacity_bytes
    except Exception:
        phys = 64 << 20                           # assume the smallest (v7x per-TC)
    return int(min(max(need * 1.25, 32 << 20), phys * 3 // 4))


class EnergyLossContrast:
    """JAX/Pallas port of EnergyLossContrast(criterion='SimCLR', temperature)."""

    def __init__(self, criterion="SimCLR", temperature=1.0,
                 matmul_dtype=jnp.bfloat16):
        if criterion != "SimCLR":
            raise NotImplementedError(
                "Only the 'SimCLR' (NTXentLoss) criterion is implemented in Pallas."
            )
        self.temperature = float(temperature)
        self.matmul_dtype = matmul_dtype   # MXU operand dtype; accumulation is f32.

    def _pallas_rows(self, z, B, Bp, Dp, tm, single_buffer):
        num_tiles = Bp // tm
        kern = functools.partial(
            _ntxent_rows_kernel,
            inv_temperature=1.0 / self.temperature,
            batch=B, batch_padded=Bp, tile_rows=tm)

        spec_kwargs = {}
        if single_buffer:
            # Block index never changes -> one buffer suffices; halves resident VMEM.
            spec_kwargs["pipeline_mode"] = pl.Buffered(1)
        z_spec = pl.BlockSpec((2 * Bp, Dp), lambda i: (0, 0), **spec_kwargs)

        vmem_limit = _pick_vmem_limit(
            resident_bytes=z.size * z.dtype.itemsize,
            tile_rows=tm, n_keys=2 * Bp,
            n_buffers=1 if single_buffer else 2)

        return pl.pallas_call(
            kern,
            out_shape=jax.ShapeDtypeStruct((Bp, 1), jnp.float32),
            grid_spec=pltpu.PrefetchScalarGridSpec(
                num_scalar_prefetch=0,
                grid=(num_tiles,),
                in_specs=[z_spec],
                out_specs=pl.BlockSpec((tm, 1), lambda i: (i, 0))),
            compiler_params=pltpu.CompilerParams(
                # Each step writes its own output rows and there is no cross-step
                # scratch -> the row axis can be sharded across TensorCores (v7x).
                dimension_semantics=("parallel",),
                vmem_limit_bytes=vmem_limit),
        )(z)

    def __call__(self, p, t):
        assert p.shape == t.shape and p.ndim == 2
        B, D = p.shape

        # Row-tile / padding choice: (8,.)-aligned tiles, capped at 128 so the
        # working set stays bounded (v7x) and the v5e 128x128 MXU is saturated.
        Dp = _round_up(D, 128)
        if B <= 128:
            tm = _round_up(B, 8)
            Bp = tm
        else:
            tm = 128
            Bp = _round_up(B, 128)

        # One fused pre-pass over the inputs: L2-normalize in f32, zero-pad
        # rows/cols, fuse both views into a single [2*Bp, Dp] key/query buffer and
        # cast to the MXU dtype.  Doing this here (rather than in an i==0 VMEM key
        # scratch) keeps the grid free of cross-step state so it can run "parallel";
        # the traffic is the same as the pad+cast pass that is needed anyway.
        def _norm(x):
            x = x.astype(jnp.float32)
            ss = jnp.sum(x * x, axis=-1, keepdims=True)
            # == F.normalize(x, dim=1, eps=1e-12)
            return x * lax.rsqrt(jnp.maximum(ss, jnp.float32(1e-24)))

        pad = ((0, Bp - B), (0, Dp - D))
        z = jnp.concatenate([jnp.pad(_norm(p), pad), jnp.pad(_norm(t), pad)], axis=0)
        z = z.astype(self.matmul_dtype)

        try:
            rows = self._pallas_rows(z, B, Bp, Dp, tm, single_buffer=True)
        except Exception:
            # pl.Buffered(1) not supported on this jax/libtpu -> default buffering.
            rows = self._pallas_rows(z, B, Bp, Dp, tm, single_buffer=False)

        return jnp.sum(rows) / jnp.float32(2 * B)


def _ntxent_reference(p, t, temperature):
    """Pure-JAX reference mirroring lightly's NTXentLoss (no memory bank)."""
    eps = 1e-12
    p_n = p / jnp.maximum(jnp.linalg.norm(p, axis=-1, keepdims=True), eps)
    t_n = t / jnp.maximum(jnp.linalg.norm(t, axis=-1, keepdims=True), eps)
    z = jnp.concatenate([p_n, t_n], axis=0)
    B = p.shape[0]
    n = 2 * B
    logits = (z @ z.T) / temperature
    diag = jnp.eye(n, dtype=bool)
    logits_nd = logits[~diag].reshape(n, n - 1)
    labels = jnp.concatenate([jnp.arange(B) + B - 1, jnp.arange(B)])
    logp = jax.nn.log_softmax(logits_nd, axis=-1)
    return -jnp.mean(jnp.take_along_axis(logp, labels[:, None], axis=-1))


if __name__ == "__main__":
    key = jax.random.PRNGKey(0)
    kp, kt, kp2, kt2, kp3, kt3 = jax.random.split(key, 6)

    # Small shape consistent with the module: batch of 8 embedding pairs, 32-d feats.
    B, D = 8, 32
    p = jax.random.normal(kp, (B, D), dtype=jnp.float32)
    t = jax.random.normal(kt, (B, D), dtype=jnp.float32)
    ref = _ntxent_reference(p, t, 0.5)
    loss_f32 = jax.block_until_ready(
        EnergyLossContrast("SimCLR", 0.5, matmul_dtype=jnp.float32)(p, t))
    assert jnp.allclose(loss_f32, ref, rtol=1e-4, atol=1e-4), (loss_f32, ref)
    loss_bf16 = jax.block_until_ready(EnergyLossContrast("SimCLR", 0.5)(p, t))
    assert jnp.allclose(loss_bf16, ref, rtol=3e-2, atol=3e-2), (loss_bf16, ref)

    # Larger shape: 3 row tiles of 128 plus the D -> 128 zero-padding path.
    B2, D2 = 384, 96
    p2 = jax.random.normal(kp2, (B2, D2), dtype=jnp.float32)
    t2 = jax.random.normal(kt2, (B2, D2), dtype=jnp.float32)
    ref2 = _ntxent_reference(p2, t2, 0.5)
    loss2_f32 = jax.block_until_ready(
        EnergyLossContrast("SimCLR", 0.5, matmul_dtype=jnp.float32)(p2, t2))
    assert jnp.allclose(loss2_f32, ref2, rtol=1e-4, atol=1e-4), (loss2_f32, ref2)
    loss2_bf16 = jax.block_until_ready(EnergyLossContrast("SimCLR", 0.5)(p2, t2))
    assert jnp.allclose(loss2_bf16, ref2, rtol=3e-2, atol=3e-2), (loss2_bf16, ref2)

    # Awkward batch: exercises the batch-row padding + padded-key-column masking.
    B3, D3 = 20, 40
    p3 = jax.random.normal(kp3, (B3, D3), dtype=jnp.float32)
    t3 = jax.random.normal(kt3, (B3, D3), dtype=jnp.float32)
    ref3 = _ntxent_reference(p3, t3, 0.5)
    loss3_f32 = jax.block_until_ready(
        EnergyLossContrast("SimCLR", 0.5, matmul_dtype=jnp.float32)(p3, t3))
    assert jnp.allclose(loss3_f32, ref3, rtol=1e-4, atol=1e-4), (loss3_f32, ref3)
    loss3_bf16 = jax.block_until_ready(EnergyLossContrast("SimCLR", 0.5)(p3, t3))
    assert jnp.allclose(loss3_bf16, ref3, rtol=3e-2, atol=3e-2), (loss3_bf16, ref3)

    print("KERNEL_OK")
</pallas_src>

<mosaic_0001>
module attributes {stable_mosaic.version = 11 : i64} {
  func.func @_ntxent_rows_kernel(%arg0: i32, %arg1: memref<16x128xf32, #tpu.memory_space<vmem>>, %arg2: memref<8x1xf32, #tpu.memory_space<vmem>>) attributes {dimension_semantics = [#tpu.dimension_semantics<parallel>], iteration_bounds = array<i64: 1>, scalar_prefetch = 0 : i64, scratch_operands = 0 : i64, tpu.core_type = #tpu.core_type<tc>, window_params = [{pipeline_mode = #tpu.pipeline_mode<synchronous>, transform_indices = @transform_0, window_bounds = array<i64: 16, 128>}, {transform_indices = @transform_1, window_bounds = array<i64: 8, 1>}]} {
    %c8_i32 = arith.constant 8 : i32
    %0 = arith.muli %arg0, %c8_i32 : i32
    %1 = tpu.assume_multiple %0, 8 : i32
    %c8_i32_0 = arith.constant 8 : i32
    %2 = arith.muli %arg0, %c8_i32_0 : i32
    %c8_i32_1 = arith.constant 8 : i32
    %3 = arith.addi %c8_i32_1, %2 : i32
    %4 = tpu.assume_multiple %3, 8 : i32
    %5 = arith.index_cast %1 : i32 to index
    %c0 = arith.constant 0 : index
    %6 = vector.load %arg1[%5, %c0] : memref<16x128xf32, #tpu.memory_space<vmem>>, vector<8x128xf32>
    %7 = arith.index_cast %4 : i32 to index
    %c0_2 = arith.constant 0 : index
    %8 = vector.load %arg1[%7, %c0_2] : memref<16x128xf32, #tpu.memory_space<vmem>>, vector<8x128xf32>
    %c0_3 = arith.constant 0 : index
    %c0_4 = arith.constant 0 : index
    %9 = vector.load %arg1[%c0_3, %c0_4] : memref<16x128xf32, #tpu.memory_space<vmem>>, vector<16x128xf32>
    %cst = arith.constant dense<0.000000e+00> : vector<8x16xf32>
    %10 = tpu.matmul %6, %9, %cst {dimension_numbers = #tpu.dot_dimension_numbers<[1], [1], [0], [0], [0, 0, 1, 0], [], []>} : vector<8x128xf32>, vector<16x128xf32>, vector<8x16xf32> -> vector<8x16xf32>
    %cst_5 = arith.constant 2.000000e+00 : f32
    %11 = vector.broadcast %cst_5 : f32 to vector<8x16xf32>
    %12 = arith.mulf %10, %11 : vector<8x16xf32>
    %cst_6 = arith.constant dense<0.000000e+00> : vector<8x16xf32>
    %13 = tpu.matmul %8, %9, %cst_6 {dimension_numbers = #tpu.dot_dimension_numbers<[1], [1], [0], [0], [0, 0, 1, 0], [], []>} : vector<8x128xf32>, vector<16x128xf32>, vector<8x16xf32> -> vector<8x16xf32>
    %cst_7 = arith.constant 2.000000e+00 : f32
    %14 = vector.broadcast %cst_7 : f32 to vector<8x16xf32>
    %15 = arith.mulf %13, %14 : vector<8x16xf32>
    %16 = tpu.iota {dimensions = array<i32: 1>} : vector<8x16xi32>
    %17 = tpu.iota {dimensions = array<i32: 0>} : vector<8x16xi32>
    %c8_i32_8 = arith.constant 8 : i32
    %18 = arith.muli %arg0, %c8_i32_8 : i32
    %19 = vector.broadcast %18 : i32 to vector<8x16xi32>
    %20 = arith.addi %17, %19 : vector<8x16xi32>
    %21 = arith.cmpi eq, %16, %20 : vector<8x16xi32>
    %c8_i32_9 = arith.constant 8 : i32
    %22 = vector.broadcast %c8_i32_9 : i32 to vector<8x16xi32>
    %23 = arith.addi %20, %22 : vector<8x16xi32>
    %24 = arith.cmpi eq, %16, %23 : vector<8x16xi32>
    %cst_10 = arith.constant -1.000000e+30 : f32
    %25 = vector.broadcast %cst_10 : f32 to vector<8x16xf32>
    %26 = arith.select %21, %25, %12 : vector<8x16xi1>, vector<8x16xf32>
    %cst_11 = arith.constant -1.000000e+30 : f32
    %27 = vector.broadcast %cst_11 : f32 to vector<8x16xf32>
    %28 = arith.select %24, %27, %15 : vector<8x16xi1>, vector<8x16xf32>
    %cst_12 = arith.constant 2.000000e+00 : f32
    %29 = vector.broadcast %cst_12 : f32 to vector<8x16xf32>
    %30 = arith.subf %26, %29 : vector<8x16xf32>
    %31 = math.exp %30 : vector<8x16xf32>
    %cst_13 = arith.constant dense<0.000000e+00> : vector<8xf32>
    %32 = vector.multi_reduction <add>, %31, %cst_13 [1] : vector<8x16xf32> to vector<8xf32>
    %33 = vector.shape_cast %32 : vector<8xf32> to vector<8x1xf32>
    %34 = math.log %33 : vector<8x1xf32>
    %cst_14 = arith.constant 2.000000e+00 : f32
    %35 = vector.broadcast %cst_14 : f32 to vector<8x1xf32>
    %36 = arith.addf %35, %34 : vector<8x1xf32>
    %cst_15 = arith.constant 2.000000e+00 : f32
    %37 = vector.broadcast %cst_15 : f32 to vector<8x16xf32>
    %38 = arith.subf %28, %37 : vector<8x16xf32>
    %39 = math.exp %38 : vector<8x16xf32>
    %cst_16 = arith.constant dense<0.000000e+00> : vector<8xf32>
    %40 = vector.multi_reduction <add>, %39, %cst_16 [1] : vector<8x16xf32> to vector<8xf32>
    %41 = vector.shape_cast %40 : vector<8xf32> to vector<8x1xf32>
    %42 = math.log %41 : vector<8x1xf32>
    %cst_17 = arith.constant 2.000000e+00 : f32
    %43 = vector.broadcast %cst_17 : f32 to vector<8x1xf32>
    %44 = arith.addf %43, %42 : vector<8x1xf32>
    %45 = arith.mulf %6, %8 : vector<8x128xf32>
    %cst_18 = arith.constant dense<0.000000e+00> : vector<8xf32>
    %46 = vector.multi_reduction <add>, %45, %cst_18 [1] : vector<8x128xf32> to vector<8xf32>
    %47 = vector.shape_cast %46 : vector<8xf32> to vector<8x1xf32>
    %cst_19 = arith.constant 2.000000e+00 : f32
    %48 = vector.broadcast %cst_19 : f32 to vector<8x1xf32>
    %49 = arith.mulf %47, %48 : vector<8x1xf32>
    %50 = arith.subf %36, %49 : vector<8x1xf32>
    %51 = arith.subf %44, %49 : vector<8x1xf32>
    %52 = arith.addf %50, %51 : vector<8x1xf32>
    %c0_20 = arith.constant 0 : index
    %c0_21 = arith.constant 0 : index
    %53 = vector.load %arg2[%c0_20, %c0_21] : memref<8x1xf32, #tpu.memory_space<vmem>>, vector<8x1xf32>
    tpu.vector_store %arg2[%c0_20, %c0_21], %52 {strides = array<i32>} : memref<8x1xf32, #tpu.memory_space<vmem>>, vector<8x1xf32>,
    return
  }
  func.func @transform_0(%arg0: i32) -> (i32, i32) {
    %c0_i32 = arith.constant 0 : i32
    %c0_i32_0 = arith.constant 0 : i32
    %c0_i32_1 = arith.constant 0 : i32
    return %c0_i32, %c0_i32_0 : i32, i32
  }
  func.func @transform_1(%arg0: i32) -> (i32, i32) {
    %c0_i32 = arith.constant 0 : i32
    %c0_i32_0 = arith.constant 0 : i32
    return %arg0, %c0_i32 : i32, i32
  }
}

module attributes {stable_mosaic.version = 11 : i64} {
  func.func @_ntxent_rows_kernel(%arg0: i32, %arg1: memref<16x128xf32, #tpu.memory_space<vmem>>, %arg2: memref<8x1xf32, #tpu.memory_space<vmem>>) attributes {dimension_semantics = [#tpu.dimension_semantics<parallel>], iteration_bounds = array<i64: 1>, scalar_prefetch = 0 : i64, scratch_operands = 0 : i64, tpu.core_type = #tpu.core_type<tc>, window_params = [{pipeline_mode = #tpu.pipeline_mode<synchronous>, transform_indices = @transform_0, window_bounds = array<i64: 16, 128>}, {transform_indices = @transform_1, window_bounds = array<i64: 8, 1>}]} {
    %c8_i32 = arith.constant 8 : i32
    %0 = arith.muli %arg0, %c8_i32 : i32
    %1 = tpu.assume_multiple %0, 8 : i32
    %c8_i32_0 = arith.constant 8 : i32
    %2 = arith.muli %arg0, %c8_i32_0 : i32
    %c8_i32_1 = arith.constant 8 : i32
    %3 = arith.addi %c8_i32_1, %2 : i32
    %4 = tpu.assume_multiple %3, 8 : i32
    %5 = arith.index_cast %1 : i32 to index
    %c0 = arith.constant 0 : index
    %6 = vector.load %arg1[%5, %c0] : memref<16x128xf32, #tpu.memory_space<vmem>>, vector<8x128xf32>
    %7 = arith.index_cast %4 : i32 to index
    %c0_2 = arith.constant 0 : index
    %8 = vector.load %arg1[%7, %c0_2] : memref<16x128xf32, #tpu.memory_space<vmem>>, vector<8x128xf32>
    %c0_3 = arith.constant 0 : index
    %c0_4 = arith.constant 0 : index
    %9 = vector.load %arg1[%c0_3, %c0_4] : memref<16x128xf32, #tpu.memory_space<vmem>>, vector<16x128xf32>
    %cst = arith.constant dense<0.000000e+00> : vector<8x16xf32>
    %10 = tpu.matmul %6, %9, %cst {dimension_numbers = #tpu.dot_dimension_numbers<[1], [1], [0], [0], [0, 0, 1, 0], [], []>} : vector<8x128xf32>, vector<16x128xf32>, vector<8x16xf32> -> vector<8x16xf32>
    %cst_5 = arith.constant 2.000000e+00 : f32
    %11 = vector.broadcast %cst_5 : f32 to vector<8x16xf32>
    %12 = arith.mulf %10, %11 : vector<8x16xf32>
    %cst_6 = arith.constant dense<0.000000e+00> : vector<8x16xf32>
    %13 = tpu.matmul %8, %9, %cst_6 {dimension_numbers = #tpu.dot_dimension_numbers<[1], [1], [0], [0], [0, 0, 1, 0], [], []>} : vector<8x128xf32>, vector<16x128xf32>, vector<8x16xf32> -> vector<8x16xf32>
    %cst_7 = arith.constant 2.000000e+00 : f32
    %14 = vector.broadcast %cst_7 : f32 to vector<8x16xf32>
    %15 = arith.mulf %13, %14 : vector<8x16xf32>
    %16 = tpu.iota {dimensions = array<i32: 1>} : vector<8x16xi32>
    %17 = tpu.iota {dimensions = array<i32: 0>} : vector<8x16xi32>
    %c8_i32_8 = arith.constant 8 : i32
    %18 = arith.muli %arg0, %c8_i32_8 : i32
    %19 = vector.broadcast %18 : i32 to vector<8x16xi32>
    %20 = arith.addi %17, %19 : vector<8x16xi32>
    %21 = arith.cmpi eq, %16, %20 : vector<8x16xi32>
    %c8_i32_9 = arith.constant 8 : i32
    %22 = vector.broadcast %c8_i32_9 : i32 to vector<8x16xi32>
    %23 = arith.addi %20, %22 : vector<8x16xi32>
    %24 = arith.cmpi eq, %16, %23 : vector<8x16xi32>
    %cst_10 = arith.constant -1.000000e+30 : f32
    %25 = vector.broadcast %cst_10 : f32 to vector<8x16xf32>
    %26 = arith.select %21, %25, %12 : vector<8x16xi1>, vector<8x16xf32>
    %cst_11 = arith.constant -1.000000e+30 : f32
    %27 = vector.broadcast %cst_11 : f32 to vector<8x16xf32>
    %28 = arith.select %24, %27, %15 : vector<8x16xi1>, vector<8x16xf32>
    %cst_12 = arith.constant 2.000000e+00 : f32
    %29 = vector.broadcast %cst_12 : f32 to vector<8x16xf32>
    %30 = arith.subf %26, %29 : vector<8x16xf32>
    %31 = math.exp %30 : vector<8x16xf32>
    %cst_13 = arith.constant dense<0.000000e+00> : vector<8xf32>
    %32 = vector.multi_reduction <add>, %31, %cst_13 [1] : vector<8x16xf32> to vector<8xf32>
    %33 = vector.shape_cast %32 : vector<8xf32> to vector<8x1xf32>
    %34 = math.log %33 : vector<8x1xf32>
    %cst_14 = arith.constant 2.000000e+00 : f32
    %35 = vector.broadcast %cst_14 : f32 to vector<8x1xf32>
    %36 = arith.addf %35, %34 : vector<8x1xf32>
    %cst_15 = arith.constant 2.000000e+00 : f32
    %37 = vector.broadcast %cst_15 : f32 to vector<8x16xf32>
    %38 = arith.subf %28, %37 : vector<8x16xf32>
    %39 = math.exp %38 : vector<8x16xf32>
    %cst_16 = arith.constant dense<0.000000e+00> : vector<8xf32>
    %40 = vector.multi_reduction <add>, %39, %cst_16 [1] : vector<8x16xf32> to vector<8xf32>
    %41 = vector.shape_cast %40 : vector<8xf32> to vector<8x1xf32>
    %42 = math.log %41 : vector<8x1xf32>
    %cst_17 = arith.constant 2.000000e+00 : f32
    %43 = vector.broadcast %cst_17 : f32 to vector<8x1xf32>
    %44 = arith.addf %43, %42 : vector<8x1xf32>
    %45 = arith.mulf %6, %8 : vector<8x128xf32>
    %cst_18 = arith.constant dense<0.000000e+00> : vector<8xf32>
    %46 = vector.multi_reduction <add>, %45, %cst_18 [1] : vector<8x128xf32> to vector<8xf32>
    %47 = vector.shape_cast %46 : vector<8xf32> to vector<8x1xf32>
    %cst_19 = arith.constant 2.000000e+00 : f32
    %48 = vector.broadcast %cst_19 : f32 to vector<8x1xf32>
    %49 = arith.mulf %47, %48 : vector<8x1xf32>
    %50 = arith.subf %36, %49 : vector<8x1xf32>
    %51 = arith.subf %44, %49 : vector<8x1xf32>
    %52 = arith.addf %50, %51 : vector<8x1xf32>
    %c0_20 = arith.constant 0 : index
    %c0_21 = arith.constant 0 : index
    %53 = vector.load %arg2[%c0_20, %c0_21] : memref<8x1xf32, #tpu.memory_space<vmem>>, vector<8x1xf32>
    tpu.vector_store %arg2[%c0_20, %c0_21], %52 {strides = array<i32>} : memref<8x1xf32, #tpu.memory_space<vmem>>, vector<8x1xf32>,
    return
  }
  func.func @transform_0(%arg0: i32) -> (i32, i32) {
    %c0_i32 = arith.constant 0 : i32
    %c0_i32_0 = arith.constant 0 : i32
    %c0_i32_1 = arith.constant 0 : i32
    return %c0_i32, %c0_i32_0 : i32, i32
  }
  func.func @transform_1(%arg0: i32) -> (i32, i32) {
    %c0_i32 = arith.constant 0 : i32
    %c0_i32_0 = arith.constant 0 : i32
    return %arg0, %c0_i32 : i32, i32
  }
}

</mosaic_0001>

<llo_original>
// kernel: tpu_custom_call.1
$region0: #{tpu_custom_call.1}
  #allocation0 [shape = 'u32[]', space=smem, size = 0x4, offset = 0x4, fixed_abs, tag = 'smem constant byte address 0x4 - core index']
  #allocation1 [shape = 'u32[144,128]{1,0:T(1,128)}', space=vmem, size = 0x12000, scoped, tag = 'internal scratch']
  %s0 = inlined_call_operand.hbm [shape: f32[16,128], index: 0, kind: input, shape index: {}]
  %s1 = inlined_call_operand.vmem [shape: f32[8,1], index: 1, kind: output, shape index: {}]
  %s2 = sld [smem:[#allocation0]]
  $region18: #{tpu_custom_call.1} parent=0
    _
  %s4 = ssub.s32 1, %s2
  %s5 = scalar_select 0, %s4, %s2
  $region1: #{tpu_custom_call.1} parent=0
    #allocation2 [shape = 'u8[8192]{0}', space=vmem, size = 0x2000, scoped, tag = 'input window, operand 0, single buffered']
    #allocation3 [shape = 's32[1]{0}', space=sflag, size = 0x4, scoped, tag = 'scoped memory for tpu_custom_call.1']
    %6 = vsyncpa [#allocation3], 0
    // Predicated region
    $region2: #{tpu_custom_call.1} parent=1 // pred_check
      _
    $region3: #{tpu_custom_call.1} parent=1 // pred_check_branch
      %8 = sbr.rel (0) target = $region5
    $region4: #{tpu_custom_call.1} parent=1 // pred_region
      %s10 = ssub.s32 256, 256
      %11 = vsyncadd [#allocation3], %s10
      %s12 = sshll.u32 [#allocation2], 4
      %s13 = int_to_ptr.vmem [resolvable:$true] %s12
      %18 = dma.hbm_to_vmem [thread:$0]  %s0, 256, %s13, [#allocation3], 128, 128, 8
    $region5: #{tpu_custom_call.1} parent=1 // pred_fallthru
      _
    // Predicated region
    $region6: #{tpu_custom_call.1} parent=1 // pred_check
      _
    $region7: #{tpu_custom_call.1} parent=1 // pred_check_branch
      %20 = sbr.rel (0) target = $region9
    $region8: #{tpu_custom_call.1} parent=1 // pred_region
      %21 = dma.done [#allocation3], 256
    $region9: #{tpu_custom_call.1} parent=1 // pred_fallthru
      _
    %s22 = smul.u32 0, 8
    %s23 = sadd.s32 %s22, 8
    %s24 = scalar_lea.vmem [#allocation2], %s22
    %v25 = vld [vmem:[%s24] sm:$0xff]
    %s26 = scalar_lea.vmem [#allocation2], %s23
    %v27 = vld [vmem:[%s26] sm:$0xff]
    %v28 = vld [vmem:[#allocation2] sm:$0xff]
    %v29 = vld [vmem:[#allocation2 + $0x8] sm:$0xff]
    %30 = vmatprep.subr.mxu0 0.0
    %31 = vmatpush1.xpose.msra.mxu0 %v28
    %32 = vmatprep.subr.mxu0 0.0
    %33 = vmatpush1.xpose.msra.mxu0 %v29
    %34 = vmatprep.subr.mxu0 0.0
    %35 = vmatpush1.xpose.msra.mxu0 0.0
    %36 = vmatprep.subr.mxu0 0.0
    %37 = vmatpush1.xpose.msra.mxu0 0.0
    %38 = vmatprep.subr.mxu0 0.0
    %39 = vmatpush1.xpose.msra.mxu0 0.0
    %40 = vmatprep.subr.mxu0 0.0
    %41 = vmatpush1.xpose.msra.mxu0 0.0
    %42 = vmatprep.subr.mxu0 0.0
    %43 = vmatpush1.xpose.msra.mxu0 0.0
    %44 = vmatprep.subr.mxu0 0.0
    %45 = vmatpush1.xpose.msra.mxu0 0.0
    %46 = vmatprep.subr.mxu0 0.0
    %47 = vmatpush1.xpose.msra.mxu0 0.0
    %48 = vmatprep.subr.mxu0 0.0
    %49 = vmatpush1.xpose.msra.mxu0 0.0
    %50 = vmatprep.subr.mxu0 0.0
    %51 = vmatpush1.xpose.msra.mxu0 0.0
    %52 = vmatprep.subr.mxu0 0.0
    %53 = vmatpush1.xpose.msra.mxu0 0.0
    %54 = vmatprep.subr.mxu0 0.0
    %55 = vmatpush1.xpose.msra.mxu0 0.0
    %56 = vmatprep.subr.mxu0 0.0
    %57 = vmatpush1.xpose.msra.mxu0 0.0
    %58 = vmatprep.subr.mxu0 0.0
    %59 = vmatpush1.xpose.msra.mxu0 0.0
    %60 = vmatprep.subr.mxu0 0.0
    %61 = vmatpush1.xpose.msra.mxu0 0.0
    %62 = vmatprep.subr.mxu0 0.0
    %63 = vmatpush1.xpose.msra.mxu0 0.0
    %64 = vmatprep.subr.mxu0 0.0
    %65 = vmatpush1.xpose.msra.mxu0 0.0
    %66 = vmatprep.subr.mxu0 0.0
    %67 = vmatpush1.xpose.msra.mxu0 0.0
    %68 = vmatprep.subr.mxu0 0.0
    %69 = vmatpush1.xpose.msra.mxu0 0.0
    %70 = vmatprep.subr.mxu0 0.0
    %71 = vmatpush1.xpose.msra.mxu0 0.0
    %72 = vmatprep.subr.mxu0 0.0
    %73 = vmatpush1.xpose.msra.mxu0 0.0
    %74 = vmatprep.subr.mxu0 0.0
    %75 = vmatpush1.xpose.msra.mxu0 0.0
    %76 = vmatprep.subr.mxu0 0.0
    %77 = vmatpush1.xpose.msra.mxu0 0.0
    %78 = vmatprep.subr.mxu0 0.0
    %79 = vmatpush1.xpose.msra.mxu0 0.0
    %80 = vmatprep.subr.mxu0 0.0
    %81 = vmatpush1.xpose.msra.mxu0 0.0
    %82 = vmatprep.subr.mxu0 0.0
    %83 = vmatpush1.xpose.msra.mxu0 0.0
    %84 = vmatprep.subr.mxu0 0.0
    %85 = vmatpush1.xpose.msra.mxu0 0.0
    %86 = vmatprep.subr.mxu0 0.0
    %87 = vmatpush1.xpose.msra.mxu0 0.0
    %88 = vmatprep.subr.mxu0 0.0
    %89 = vmatpush1.xpose.msra.mxu0 0.0
    %90 = vmatprep.subr.mxu0 0.0
    %91 = vmatpush1.xpose.msra.mxu0 0.0
    %92 = vmatprep.subr.mxu0 0.0
    %93 = vmatpush1.xpose.msra.mxu0 0.0
    %94 = vmatprep.mubr.f32.mxu0 0.0
    %95 = vmatmul.mubr.f32.gmra.mrb[0].mxu0 %v25
    %v96 = vpop.f32.mrb[0].mxu0
    %v97 = vadd.f32 0.0, %v96
    %v98 = vpop.f32.mrb[0].mxu0
    %99 = vdwg.mxu0
    %v100 = vmul.f32 %v97, 2.0
    %101 = vmatprep.subr.mxu0 0.0
    %102 = vmatpush1.xpose.msra.mxu0 %v28
    %103 = vmatprep.subr.mxu0 0.0
    %104 = vmatpush1.xpose.msra.mxu0 %v29
    %105 = vmatprep.subr.mxu0 0.0
    %106 = vmatpush1.xpose.msra.mxu0 0.0
    %107 = vmatprep.subr.mxu0 0.0
    %108 = vmatpush1.xpose.msra.mxu0 0.0
    %109 = vmatprep.subr.mxu0 0.0
    %110 = vmatpush1.xpose.msra.mxu0 0.0
    %111 = vmatprep.subr.mxu0 0.0
    %112 = vmatpush1.xpose.msra.mxu0 0.0
    %113 = vmatprep.subr.mxu0 0.0
    %114 = vmatpush1.xpose.msra.mxu0 0.0
    %115 = vmatprep.subr.mxu0 0.0
    %116 = vmatpush1.xpose.msra.mxu0 0.0
    %117 = vmatprep.subr.mxu0 0.0
    %118 = vmatpush1.xpose.msra.mxu0 0.0
    %119 = vmatprep.subr.mxu0 0.0
    %120 = vmatpush1.xpose.msra.mxu0 0.0
    %121 = vmatprep.subr.mxu0 0.0
    %122 = vmatpush1.xpose.msra.mxu0 0.0
    %123 = vmatprep.subr.mxu0 0.0
    %124 = vmatpush1.xpose.msra.mxu0 0.0
    %125 = vmatprep.subr.mxu0 0.0
    %126 = vmatpush1.xpose.msra.mxu0 0.0
    %127 = vmatprep.subr.mxu0 0.0
    %128 = vmatpush1.xpose.msra.mxu0 0.0
    %129 = vmatprep.subr.mxu0 0.0
    %130 = vmatpush1.xpose.msra.mxu0 0.0
    %131 = vmatprep.subr.mxu0 0.0
    %132 = vmatpush1.xpose.msra.mxu0 0.0
    %133 = vmatprep.subr.mxu0 0.0
    %134 = vmatpush1.xpose.msra.mxu0 0.0
    %135 = vmatprep.subr.mxu0 0.0
    %136 = vmatpush1.xpose.msra.mxu0 0.0
    %137 = vmatprep.subr.mxu0 0.0
    %138 = vmatpush1.xpose.msra.mxu0 0.0
    %139 = vmatprep.subr.mxu0 0.0
    %140 = vmatpush1.xpose.msra.mxu0 0.0
    %141 = vmatprep.subr.mxu0 0.0
    %142 = vmatpush1.xpose.msra.mxu0 0.0
    %143 = vmatprep.subr.mxu0 0.0
    %144 = vmatpush1.xpose.msra.mxu0 0.0
    %145 = vmatprep.subr.mxu0 0.0
    %146 = vmatpush1.xpose.msra.mxu0 0.0
    %147 = vmatprep.subr.mxu0 0.0
    %148 = vmatpush1.xpose.msra.mxu0 0.0
    %149 = vmatprep.subr.mxu0 0.0
    %150 = vmatpush1.xpose.msra.mxu0 0.0
    %151 = vmatprep.subr.mxu0 0.0
    %152 = vmatpush1.xpose.msra.mxu0 0.0
    %153 = vmatprep.subr.mxu0 0.0
    %154 = vmatpush1.xpose.msra.mxu0 0.0
    %155 = vmatprep.subr.mxu0 0.0
    %156 = vmatpush1.xpose.msra.mxu0 0.0
    %157 = vmatprep.subr.mxu0 0.0
    %158 = vmatpush1.xpose.msra.mxu0 0.0
    %159 = vmatprep.subr.mxu0 0.0
    %160 = vmatpush1.xpose.msra.mxu0 0.0
    %161 = vmatprep.subr.mxu0 0.0
    %162 = vmatpush1.xpose.msra.mxu0 0.0
    %163 = vmatprep.subr.mxu0 0.0
    %164 = vmatpush1.xpose.msra.mxu0 0.0
    %165 = vmatprep.mubr.f32.mxu0 0.0
    %166 = vmatmul.mubr.f32.gmra.mrb[0].mxu0 %v27
    %v167 = vpop.f32.mrb[0].mxu0
    %v168 = vadd.f32 0.0, %v167
    %v169 = vpop.f32.mrb[0].mxu0
    %170 = vdwg.mxu0
    %v171 = vmul.f32 %v168, 2.0
    %v172 = vlaneseq
    %v173 = vand.u32 %v172, 127
    %v174 = vlaneseq
    %v175 = vshrl.u32 %v174, 7
    %v176 = vstv %s22
    %v177 = vadd.s32 %v175, %v176
    %vm178 = vcmp.eq.s32.totalorder %v173, %v177
    %v179 = vadd.s32 %v177, 8
    %vm180 = vcmp.eq.s32.totalorder %v173, %v179
    %v181 = vsel %vm178, -1e+30, %v100
    %v182 = vsel %vm180, -1e+30, %v171
    %v183 = vsub.f32 %v181, 2.0
    %v184 = vmul.f32 %v183, 1.442695
    %v185 = vpow.pop %v184
    %vm186 = vcmask 130048
    %v187 = vsel %vm186, %v185, 0.0
    %188 = vadd.xlane.f32.xlu0 %v187
    %v189 = vpop.xlane.xlu0 %188
    %v190 = vlog2.pop %v189
    %v191 = vmul.f32 %v190, 0.6931472
    %v192 = vadd.f32 %v191, 2.0
    %v193 = vsub.f32 %v182, 2.0
    %v194 = vmul.f32 %v193, 1.442695
    %v195 = vpow.pop %v194
    %v196 = vsel %vm186, %v195, 0.0
    %197 = vadd.xlane.f32.xlu0 %v196
    %v198 = vpop.xlane.xlu0 %197
    %v199 = vlog2.pop %v198
    %v200 = vmul.f32 %v199, 0.6931472
    %v201 = vadd.f32 %v200, 2.0
    %v202 = vmul.f32 %v25, %v27
    %203 = vadd.xlane.f32.xlu0 %v202
    %v204 = vpop.xlane.xlu0 %203
    %v205 = vmul.f32 %v204, 2.0
    %v206 = vsub.f32 %v192, %v205
    %v207 = vsub.f32 %v201, %v205
    %v208 = vadd.f32 %v206, %v207
    %vm209 = vcmask 7168
    %210 = vst.msk [vmem:[%s1] sm:$0xff] %vm209, %v208
    // Predicated region
    $region10: #{tpu_custom_call.1} parent=1 // pred_check
      _
    $region11: #{tpu_custom_call.1} parent=1 // pred_check_branch
      %212 = sbr.rel (0) target = $region13
    $region12: #{tpu_custom_call.1} parent=1 // pred_region
      _
    $region13: #{tpu_custom_call.1} parent=1 // pred_fallthru
      _
    // Predicated region
    $region14: #{tpu_custom_call.1} parent=1 // pred_check
      _
    $region15: #{tpu_custom_call.1} parent=1 // pred_check_branch
      %214 = sbr.rel (0) target = $region17
    $region16: #{tpu_custom_call.1} parent=1 // pred_region
      _
    $region17: #{tpu_custom_call.1} parent=1 // pred_fallthru
      _
    %215 = vsyncpa [#allocation3], 1

// kernel: tpu_custom_call.1
$region0: #{tpu_custom_call.1}
  #allocation0 [shape = 'u32[]', space=smem, size = 0x4, offset = 0x4, fixed_abs, tag = 'smem constant byte address 0x4 - core index']
  #allocation1 [shape = 'u32[144,128]{1,0:T(1,128)}', space=vmem, size = 0x12000, scoped, tag = 'internal scratch']
  %s0 = inlined_call_operand.hbm [shape: f32[16,128], index: 0, kind: input, shape index: {}]
  %s1 = inlined_call_operand.vmem [shape: f32[8,1], index: 1, kind: output, shape index: {}]
  %s2 = sld [smem:[#allocation0]]
  $region18: #{tpu_custom_call.1} parent=0
    _
  %s4 = ssub.s32 1, %s2
  %s5 = scalar_select 0, %s4, %s2
  $region1: #{tpu_custom_call.1} parent=0
    #allocation2 [shape = 'u8[8192]{0}', space=vmem, size = 0x2000, scoped, tag = 'input window, operand 0, single buffered']
    #allocation3 [shape = 's32[1]{0}', space=sflag, size = 0x4, scoped, tag = 'scoped memory for tpu_custom_call.1']
    %6 = vsyncpa [#allocation3], 0
    // Predicated region
    $region2: #{tpu_custom_call.1} parent=1 // pred_check
      _
    $region3: #{tpu_custom_call.1} parent=1 // pred_check_branch
      %8 = sbr.rel (0) target = $region5
    $region4: #{tpu_custom_call.1} parent=1 // pred_region
      %s10 = ssub.s32 256, 256
      %11 = vsyncadd [#allocation3], %s10
      %s12 = sshll.u32 [#allocation2], 4
      %s13 = int_to_ptr.vmem [resolvable:$true] %s12
      %18 = dma.hbm_to_vmem [thread:$0]  %s0, 256, %s13, [#allocation3], 128, 128, 8
    $region5: #{tpu_custom_call.1} parent=1 // pred_fallthru
      _
    // Predicated region
    $region6: #{tpu_custom_call.1} parent=1 // pred_check
      _
    $region7: #{tpu_custom_call.1} parent=1 // pred_check_branch
      %20 = sbr.rel (0) target = $region9
    $region8: #{tpu_custom_call.1} parent=1 // pred_region
      %21 = dma.done [#allocation3], 256
    $region9: #{tpu_custom_call.1} parent=1 // pred_fallthru
      _
    %s22 = smul.u32 0, 8
    %s23 = sadd.s32 %s22, 8
    %s24 = scalar_lea.vmem [#allocation2], %s22
    %v25 = vld [vmem:[%s24] sm:$0xff]
    %s26 = scalar_lea.vmem [#allocation2], %s23
    %v27 = vld [vmem:[%s26] sm:$0xff]
    %v28 = vld [vmem:[#allocation2] sm:$0xff]
    %v29 = vld [vmem:[#allocation2 + $0x8] sm:$0xff]
    %30 = vmatprep.subr.mxu0 0.0
    %31 = vmatpush1.xpose.msra.mxu0 %v28
    %32 = vmatprep.subr.mxu0 0.0
    %33 = vmatpush1.xpose.msra.mxu0 %v29
    %34 = vmatprep.subr.mxu0 0.0
    %35 = vmatpush1.xpose.msra.mxu0 0.0
    %36 = vmatprep.subr.mxu0 0.0
    %37 = vmatpush1.xpose.msra.mxu0 0.0
    %38 = vmatprep.subr.mxu0 0.0
    %39 = vmatpush1.xpose.msra.mxu0 0.0
    %40 = vmatprep.subr.mxu0 0.0
    %41 = vmatpush1.xpose.msra.mxu0 0.0
    %42 = vmatprep.subr.mxu0 0.0
    %43 = vmatpush1.xpose.msra.mxu0 0.0
    %44 = vmatprep.subr.mxu0 0.0
    %45 = vmatpush1.xpose.msra.mxu0 0.0
    %46 = vmatprep.subr.mxu0 0.0
    %47 = vmatpush1.xpose.msra.mxu0 0.0
    %48 = vmatprep.subr.mxu0 0.0
    %49 = vmatpush1.xpose.msra.mxu0 0.0
    %50 = vmatprep.subr.mxu0 0.0
    %51 = vmatpush1.xpose.msra.mxu0 0.0
    %52 = vmatprep.subr.mxu0 0.0
    %53 = vmatpush1.xpose.msra.mxu0 0.0
    %54 = vmatprep.subr.mxu0 0.0
    %55 = vmatpush1.xpose.msra.mxu0 0.0
    %56 = vmatprep.subr.mxu0 0.0
    %57 = vmatpush1.xpose.msra.mxu0 0.0
    %58 = vmatprep.subr.mxu0 0.0
    %59 = vmatpush1.xpose.msra.mxu0 0.0
    %60 = vmatprep.subr.mxu0 0.0
    %61 = vmatpush1.xpose.msra.mxu0 0.0
    %62 = vmatprep.subr.mxu0 0.0
    %63 = vmatpush1.xpose.msra.mxu0 0.0
    %64 = vmatprep.subr.mxu0 0.0
    %65 = vmatpush1.xpose.msra.mxu0 0.0
    %66 = vmatprep.subr.mxu0 0.0
    %67 = vmatpush1.xpose.msra.mxu0 0.0
    %68 = vmatprep.subr.mxu0 0.0
    %69 = vmatpush1.xpose.msra.mxu0 0.0
    %70 = vmatprep.subr.mxu0 0.0
    %71 = vmatpush1.xpose.msra.mxu0 0.0
    %72 = vmatprep.subr.mxu0 0.0
    %73 = vmatpush1.xpose.msra.mxu0 0.0
    %74 = vmatprep.subr.mxu0 0.0
    %75 = vmatpush1.xpose.msra.mxu0 0.0
    %76 = vmatprep.subr.mxu0 0.0
    %77 = vmatpush1.xpose.msra.mxu0 0.0
    %78 = vmatprep.subr.mxu0 0.0
    %79 = vmatpush1.xpose.msra.mxu0 0.0
    %80 = vmatprep.subr.mxu0 0.0
    %81 = vmatpush1.xpose.msra.mxu0 0.0
    %82 = vmatprep.subr.mxu0 0.0
    %83 = vmatpush1.xpose.msra.mxu0 0.0
    %84 = vmatprep.subr.mxu0 0.0
    %85 = vmatpush1.xpose.msra.mxu0 0.0
    %86 = vmatprep.subr.mxu0 0.0
    %87 = vmatpush1.xpose.msra.mxu0 0.0
    %88 = vmatprep.subr.mxu0 0.0
    %89 = vmatpush1.xpose.msra.mxu0 0.0
    %90 = vmatprep.subr.mxu0 0.0
    %91 = vmatpush1.xpose.msra.mxu0 0.0
    %92 = vmatprep.subr.mxu0 0.0
    %93 = vmatpush1.xpose.msra.mxu0 0.0
    %94 = vmatprep.mubr.f32.mxu0 0.0
    %95 = vmatmul.mubr.f32.gmra.mrb[0].mxu0 %v25
    %v96 = vpop.f32.mrb[0].mxu0
    %v97 = vadd.f32 0.0, %v96
    %v98 = vpop.f32.mrb[0].mxu0
    %99 = vdwg.mxu0
    %v100 = vmul.f32 %v97, 2.0
    %101 = vmatprep.subr.mxu0 0.0
    %102 = vmatpush1.xpose.msra.mxu0 %v28
    %103 = vmatprep.subr.mxu0 0.0
    %104 = vmatpush1.xpose.msra.mxu0 %v29
    %105 = vmatprep.subr.mxu0 0.0
    %106 = vmatpush1.xpose.msra.mxu0 0.0
    %107 = vmatprep.subr.mxu0 0.0
    %108 = vmatpush1.xpose.msra.mxu0 0.0
    %109 = vmatprep.subr.mxu0 0.0
    %110 = vmatpush1.xpose.msra.mxu0 0.0
    %111 = vmatprep.subr.mxu0 0.0
    %112 = vmatpush1.xpose.msra.mxu0 0.0
    %113 = vmatprep.subr.mxu0 0.0
    %114 = vmatpush1.xpose.msra.mxu0 0.0
    %115 = vmatprep.subr.mxu0 0.0
    %116 = vmatpush1.xpose.msra.mxu0 0.0
    %117 = vmatprep.subr.mxu0 0.0
    %118 = vmatpush1.xpose.msra.mxu0 0.0
    %119 = vmatprep.subr.mxu0 0.0
    %120 = vmatpush1.xpose.msra.mxu0 0.0
    %121 = vmatprep.subr.mxu0 0.0
    %122 = vmatpush1.xpose.msra.mxu0 0.0
    %123 = vmatprep.subr.mxu0 0.0
    %124 = vmatpush1.xpose.msra.mxu0 0.0
    %125 = vmatprep.subr.mxu0 0.0
    %126 = vmatpush1.xpose.msra.mxu0 0.0
    %127 = vmatprep.subr.mxu0 0.0
    %128 = vmatpush1.xpose.msra.mxu0 0.0
    %129 = vmatprep.subr.mxu0 0.0
    %130 = vmatpush1.xpose.msra.mxu0 0.0
    %131 = vmatprep.subr.mxu0 0.0
    %132 = vmatpush1.xpose.msra.mxu0 0.0
    %133 = vmatprep.subr.mxu0 0.0
    %134 = vmatpush1.xpose.msra.mxu0 0.0
    %135 = vmatprep.subr.mxu0 0.0
    %136 = vmatpush1.xpose.msra.mxu0 0.0
    %137 = vmatprep.subr.mxu0 0.0
    %138 = vmatpush1.xpose.msra.mxu0 0.0
    %139 = vmatprep.subr.mxu0 0.0
    %140 = vmatpush1.xpose.msra.mxu0 0.0
    %141 = vmatprep.subr.mxu0 0.0
    %142 = vmatpush1.xpose.msra.mxu0 0.0
    %143 = vmatprep.subr.mxu0 0.0
    %144 = vmatpush1.xpose.msra.mxu0 0.0
    %145 = vmatprep.subr.mxu0 0.0
    %146 = vmatpush1.xpose.msra.mxu0 0.0
    %147 = vmatprep.subr.mxu0 0.0
    %148 = vmatpush1.xpose.msra.mxu0 0.0
    %149 = vmatprep.subr.mxu0 0.0
    %150 = vmatpush1.xpose.msra.mxu0 0.0
    %151 = vmatprep.subr.mxu0 0.0
    %152 = vmatpush1.xpose.msra.mxu0 0.0
    %153 = vmatprep.subr.mxu0 0.0
    %154 = vmatpush1.xpose.msra.mxu0 0.0
    %155 = vmatprep.subr.mxu0 0.0
    %156 = vmatpush1.xpose.msra.mxu0 0.0
    %157 = vmatprep.subr.mxu0 0.0
    %158 = vmatpush1.xpose.msra.mxu0 0.0
    %159 = vmatprep.subr.mxu0 0.0
    %160 = vmatpush1.xpose.msra.mxu0 0.0
    %161 = vmatprep.subr.mxu0 0.0
    %162 = vmatpush1.xpose.msra.mxu0 0.0
    %163 = vmatprep.subr.mxu0 0.0
    %164 = vmatpush1.xpose.msra.mxu0 0.0
    %165 = vmatprep.mubr.f32.mxu0 0.0
    %166 = vmatmul.mubr.f32.gmra.mrb[0].mxu0 %v27
    %v167 = vpop.f32.mrb[0].mxu0
    %v168 = vadd.f32 0.0, %v167
    %v169 = vpop.f32.mrb[0].mxu0
    %170 = vdwg.mxu0
    %v171 = vmul.f32 %v168, 2.0
    %v172 = vlaneseq
    %v173 = vand.u32 %v172, 127
    %v174 = vlaneseq
    %v175 = vshrl.u32 %v174, 7
    %v176 = vstv %s22
    %v177 = vadd.s32 %v175, %v176
    %vm178 = vcmp.eq.s32.totalorder %v173, %v177
    %v179 = vadd.s32 %v177, 8
    %vm180 = vcmp.eq.s32.totalorder %v173, %v179
    %v181 = vsel %vm178, -1e+30, %v100
    %v182 = vsel %vm180, -1e+30, %v171
    %v183 = vsub.f32 %v181, 2.0
    %v184 = vmul.f32 %v183, 1.442695
    %v185 = vpow.pop %v184
    %vm186 = vcmask 130048
    %v187 = vsel %vm186, %v185, 0.0
    %188 = vadd.xlane.f32.xlu0 %v187
    %v189 = vpop.xlane.xlu0 %188
    %v190 = vlog2.pop %v189
    %v191 = vmul.f32 %v190, 0.6931472
    %v192 = vadd.f32 %v191, 2.0
    %v193 = vsub.f32 %v182, 2.0
    %v194 = vmul.f32 %v193, 1.442695
    %v195 = vpow.pop %v194
    %v196 = vsel %vm186, %v195, 0.0
    %197 = vadd.xlane.f32.xlu0 %v196
    %v198 = vpop.xlane.xlu0 %197
    %v199 = vlog2.pop %v198
    %v200 = vmul.f32 %v199, 0.6931472
    %v201 = vadd.f32 %v200, 2.0
    %v202 = vmul.f32 %v25, %v27
    %203 = vadd.xlane.f32.xlu0 %v202
    %v204 = vpop.xlane.xlu0 %203
    %v205 = vmul.f32 %v204, 2.0
    %v206 = vsub.f32 %v192, %v205
    %v207 = vsub.f32 %v201, %v205
    %v208 = vadd.f32 %v206, %v207
    %vm209 = vcmask 7168
    %210 = vst.msk [vmem:[%s1] sm:$0xff] %vm209, %v208
    // Predicated region
    $region10: #{tpu_custom_call.1} parent=1 // pred_check
      _
    $region11: #{tpu_custom_call.1} parent=1 // pred_check_branch
      %212 = sbr.rel (0) target = $region13
    $region12: #{tpu_custom_call.1} parent=1 // pred_region
      _
    $region13: #{tpu_custom_call.1} parent=1 // pred_fallthru
      _
    // Predicated region
    $region14: #{tpu_custom_call.1} parent=1 // pred_check
      _
    $region15: #{tpu_custom_call.1} parent=1 // pred_check_branch
      %214 = sbr.rel (0) target = $region17
    $region16: #{tpu_custom_call.1} parent=1 // pred_region
      _
    $region17: #{tpu_custom_call.1} parent=1 // pred_fallthru
      _
    %215 = vsyncpa [#allocation3], 1

</llo_original>
